<compile_context>
chip_gen: v7x
topology: tpu7x:2x2x1
jax: 0.10.0
libtpu: 0.0.40
codegen_flags: <defaults>
</compile_context>

<pallas_src>
import jax
import jax.numpy as jnp
from jax.experimental import pallas as pl
from jax.experimental.pallas import tpu as pltpu

NUM_CLASSES = 5
CLS_PAD = 8            # class dim padded to one sublane group (class-major)
_NEG_LARGE = -1e30     # finite "-inf" for padded class sublanes


def _round_up(n, m):
    return ((n + m - 1) // m) * m


def _linear_softmax_kernel(x_ref, w_ref, b_ref, out_ref):
    # x_ref: (tile_b, D); w_ref: (8, D); b_ref: (8, 1); out_ref: (8, tile_b)
    # logits_t[c, i] = sum_d W[c, d] * x[i, d] + b[c]  (class-major)
    logits_t = jax.lax.dot_general(
        w_ref[...], x_ref[...],
        dimension_numbers=(((1,), (1,)), ((), ())),
        preferred_element_type=jnp.float32) + b_ref[...]
    cls = jax.lax.broadcasted_iota(jnp.int32, logits_t.shape, 0)
    masked = jnp.where(cls < NUM_CLASSES, logits_t, _NEG_LARGE)
    m = jnp.max(masked, axis=0, keepdims=True)
    e = jnp.exp(masked - m)                       # padded sublanes underflow to 0
    denom = jnp.sum(e, axis=0, keepdims=True)
    inv = pl.reciprocal(denom, approx=True)       # EUP slot, frees VPU divide
    out_ref[...] = (e * inv).astype(out_ref.dtype)


def _make_ce_loss_kernel(batch, tile_b):
    def kernel(x_ref, w_ref, b_ref, y_ref, loss_ref):
        i = pl.program_id(0)
        logits_t = jax.lax.dot_general(
            w_ref[...], x_ref[...],
            dimension_numbers=(((1,), (1,)), ((), ())),
            preferred_element_type=jnp.float32) + b_ref[...]
        cls = jax.lax.broadcasted_iota(jnp.int32, logits_t.shape, 0)
        masked = jnp.where(cls < NUM_CLASSES, logits_t, _NEG_LARGE)
        m = jnp.max(masked, axis=0, keepdims=True)
        lse = m + jnp.log(jnp.sum(jnp.exp(masked - m), axis=0, keepdims=True))
        # one-hot gather of the true-class logit (y_ref is (1, tile_b) int32)
        onehot = (cls == y_ref[...]).astype(jnp.float32)
        true_logit = jnp.sum(logits_t * onehot, axis=0, keepdims=True)
        # mask batch-padding columns (global row index >= batch)
        cols = jax.lax.broadcasted_iota(jnp.int32, (1, tile_b), 1) + i * tile_b
        col_valid = (cols < batch).astype(jnp.float32)
        partial = jnp.sum(col_valid * (lse - true_logit))
        loss_ref[...] = partial.reshape(1, 1, 1)   # per-tile partial sum

    return kernel


def torch_module_forward(x, w, b, y_true=None, tile_b_max=16384):
    """Mirrors TorchModule.forward.

    x: (B, D) float32
    w: (5, D) float32   (PyTorch nn.Linear weight layout)
    b: (5,)   float32
    y_true: optional (B,) int32 class indices
    """
    B, D = x.shape
    f32 = jnp.float32

    # Class-major parameters padded to one sublane group (8 classes).
    w_pad = jnp.zeros((CLS_PAD, D), f32).at[:NUM_CLASSES, :].set(w.astype(f32))
    b_pad = jnp.zeros((CLS_PAD, 1), f32).at[:NUM_CLASSES, 0].set(b.astype(f32))

    # Batch tiling: single full-extent tile when B fits; otherwise a
    # multiple-of-128 tile chosen from B so blocks stay lane-aligned and
    # batch padding stays well under one tile.
    if B <= tile_b_max:
        tile_b = _round_up(B, 8)
        num_tiles = 1
    else:
        num_tiles = -(-B // tile_b_max)
        tile_b = _round_up(-(-B // num_tiles), 128)
        num_tiles = -(-B // tile_b)
    Bp = tile_b * num_tiles

    x_p = x.astype(f32)
    if Bp != B:
        x_p = jnp.pad(x_p, ((0, Bp - B), (0, 0)))

    x_spec = pl.BlockSpec((tile_b, D), lambda i: (i, 0))
    # W / b stay resident across the grid (constant block index -> no re-DMA).
    w_spec = pl.BlockSpec((CLS_PAD, D), lambda i: (0, 0))
    b_spec = pl.BlockSpec((CLS_PAD, 1), lambda i: (0, 0))

    if y_true is None:
        out = pl.pallas_call(
            _linear_softmax_kernel,
            out_shape=jax.ShapeDtypeStruct((CLS_PAD, Bp), f32),
            grid=(num_tiles,),
            in_specs=[x_spec, w_spec, b_spec],
            out_specs=pl.BlockSpec((CLS_PAD, tile_b), lambda i: (0, i)),
            compiler_params=pltpu.CompilerParams(
                dimension_semantics=("parallel",)),
            cost_estimate=pl.CostEstimate(
                flops=2 * Bp * D * NUM_CLASSES,
                transcendentals=Bp * (CLS_PAD + 1),
                bytes_accessed=4 * (Bp * D + CLS_PAD * D + CLS_PAD
                                    + CLS_PAD * Bp)),
        )(x_p, w_pad, b_pad)
        # class-major -> (B, 5)
        return out[:NUM_CLASSES, :B].T

    y_p = jnp.zeros((1, Bp), jnp.int32).at[0, :B].set(y_true.astype(jnp.int32))
    y_spec = pl.BlockSpec((1, tile_b), lambda i: (0, i))

    partials = pl.pallas_call(
        _make_ce_loss_kernel(B, tile_b),
        out_shape=jax.ShapeDtypeStruct((num_tiles, 1, 1), f32),
        grid=(num_tiles,),
        in_specs=[x_spec, w_spec, b_spec, y_spec],
        # per-tile partial sums: batch axis stays "parallel" (v7x 2-TC sharding)
        out_specs=pl.BlockSpec((1, 1, 1), lambda i: (i, 0, 0)),
        compiler_params=pltpu.CompilerParams(
            dimension_semantics=("parallel",)),
        cost_estimate=pl.CostEstimate(
            flops=2 * Bp * D * NUM_CLASSES,
            transcendentals=Bp * (CLS_PAD + 1),
            bytes_accessed=4 * (Bp * D + CLS_PAD * D + CLS_PAD + Bp
                                + num_tiles)),
    )(x_p, w_pad, b_pad, y_p)
    # mean reduction (PyTorch CrossEntropyLoss default), finished in wrapper
    return jnp.sum(partials) / f32(B)


if __name__ == "__main__":
    key = jax.random.PRNGKey(0)
    k_w, k_b, k_x, k_y = jax.random.split(key, 4)

    batch = 8
    input_size = 32

    # nn.Linear(input_size, 5) parameter shapes (PyTorch layout).
    w = jax.random.normal(k_w, (NUM_CLASSES, input_size), jnp.float32) * 0.1
    b = jax.random.normal(k_b, (NUM_CLASSES,), jnp.float32) * 0.1

    x = jax.random.normal(k_x, (batch, input_size), jnp.float32)
    y_true = jax.random.randint(k_y, (batch,), 0, NUM_CLASSES, jnp.int32)

    # Inference path: softmax(linear(x))
    probs = jax.block_until_ready(torch_module_forward(x, w, b))
    # Training path: CrossEntropyLoss(linear(x), y_true)
    loss = jax.block_until_ready(torch_module_forward(x, w, b, y_true))

    # Sanity checks against pure-JAX reference.
    logits_ref = x @ w.T + b
    probs_ref = jax.nn.softmax(logits_ref, axis=-1)
    loss_ref = jnp.mean(
        jax.nn.logsumexp(logits_ref, axis=-1)
        - jnp.take_along_axis(logits_ref, y_true[:, None], axis=1)[:, 0])
    assert probs.shape == (batch, NUM_CLASSES)
    # probs tolerance loosened slightly: approx (EUP) reciprocal in softmax.
    assert jnp.allclose(probs, probs_ref, atol=2e-3)
    assert jnp.allclose(loss, loss_ref, atol=1e-5, rtol=1e-5)

    # Multi-tile / ragged-batch path: tile_b=128, 3 grid steps (Bp=384).
    # Exercises per-tile loss partials, padded-column masks, lane-aligned
    # multi-tile blocks, and resident W/b across iterations.
    batch2 = 300
    x2 = jax.random.normal(jax.random.PRNGKey(1), (batch2, input_size),
                           jnp.float32)
    y2 = jax.random.randint(jax.random.PRNGKey(2), (batch2,), 0, NUM_CLASSES,
                            jnp.int32)
    probs2 = jax.block_until_ready(
        torch_module_forward(x2, w, b, tile_b_max=128))
    loss2 = jax.block_until_ready(
        torch_module_forward(x2, w, b, y2, tile_b_max=128))
    logits2 = x2 @ w.T + b
    loss2_ref = jnp.mean(
        jax.nn.logsumexp(logits2, axis=-1)
        - jnp.take_along_axis(logits2, y2[:, None], axis=1)[:, 0])
    assert probs2.shape == (batch2, NUM_CLASSES)
    assert jnp.allclose(probs2, jax.nn.softmax(logits2, axis=-1), atol=2e-3)
    assert jnp.allclose(loss2, loss2_ref, atol=1e-4, rtol=1e-5)

    print("KERNEL_OK")
</pallas_src>

<mosaic_0001>
module attributes {stable_mosaic.version = 11 : i64} {
  func.func @_linear_softmax_kernel(%arg0: i32, %arg1: memref<8x32xf32, #tpu.memory_space<vmem>>, %arg2: memref<8x32xf32, #tpu.memory_space<vmem>>, %arg3: memref<8x1xf32, #tpu.memory_space<vmem>>, %arg4: memref<8x8xf32, #tpu.memory_space<vmem>>) attributes {dimension_semantics = [#tpu.dimension_semantics<parallel>], iteration_bounds = array<i64: 1>, scalar_prefetch = 0 : i64, scratch_operands = 0 : i64, tpu.core_type = #tpu.core_type<tc>, window_params = [{transform_indices = @transform_0, window_bounds = array<i64: 8, 32>}, {pipeline_mode = #tpu.pipeline_mode<synchronous>, transform_indices = @transform_1, window_bounds = array<i64: 8, 32>}, {pipeline_mode = #tpu.pipeline_mode<synchronous>, transform_indices = @transform_2, window_bounds = array<i64: 8, 1>}, {transform_indices = @transform_3, window_bounds = array<i64: 8, 8>}]} {
    %c0 = arith.constant 0 : index
    %c0_0 = arith.constant 0 : index
    %0 = vector.load %arg2[%c0, %c0_0] : memref<8x32xf32, #tpu.memory_space<vmem>>, vector<8x32xf32>
    %c0_1 = arith.constant 0 : index
    %c0_2 = arith.constant 0 : index
    %1 = vector.load %arg1[%c0_1, %c0_2] : memref<8x32xf32, #tpu.memory_space<vmem>>, vector<8x32xf32>
    %cst = arith.constant dense<0.000000e+00> : vector<8x8xf32>
    %2 = tpu.matmul %0, %1, %cst {dimension_numbers = #tpu.dot_dimension_numbers<[1], [1], [0], [0], [0, 0, 1, 0], [], []>} : vector<8x32xf32>, vector<8x32xf32>, vector<8x8xf32> -> vector<8x8xf32>
    %c0_3 = arith.constant 0 : index
    %c0_4 = arith.constant 0 : index
    %3 = vector.load %arg3[%c0_3, %c0_4] : memref<8x1xf32, #tpu.memory_space<vmem>>, vector<8x1xf32>
    %4 = vector.broadcast %3 : vector<8x1xf32> to vector<8x8xf32>
    %5 = arith.addf %2, %4 : vector<8x8xf32>
    %6 = tpu.iota {dimensions = array<i32: 0>} : vector<8x8xi32>
    %c5_i32 = arith.constant 5 : i32
    %7 = vector.broadcast %c5_i32 : i32 to vector<8x8xi32>
    %8 = arith.cmpi slt, %6, %7 : vector<8x8xi32>
    %cst_5 = arith.constant -1.000000e+30 : f32
    %9 = vector.broadcast %cst_5 : f32 to vector<8x8xf32>
    %10 = arith.select %8, %5, %9 : vector<8x8xi1>, vector<8x8xf32>
    %cst_6 = arith.constant dense<0xFF800000> : vector<8xf32>
    %11 = vector.multi_reduction <maximumf>, %10, %cst_6 [0] : vector<8x8xf32> to vector<8xf32>
    %12 = vector.shape_cast %11 : vector<8xf32> to vector<1x8xf32>
    %13 = vector.broadcast %12 : vector<1x8xf32> to vector<8x8xf32>
    %14 = arith.subf %10, %13 : vector<8x8xf32>
    %15 = math.exp %14 : vector<8x8xf32>
    %cst_7 = arith.constant dense<0.000000e+00> : vector<8xf32>
    %16 = vector.multi_reduction <add>, %15, %cst_7 [0] : vector<8x8xf32> to vector<8xf32>
    %17 = vector.shape_cast %16 : vector<8xf32> to vector<1x8xf32>
    %18 = tpu.reciprocal %17 {approx = true} : vector<1x8xf32> -> vector<1x8xf32>
    %19 = vector.broadcast %18 : vector<1x8xf32> to vector<8x8xf32>
    %20 = arith.mulf %15, %19 : vector<8x8xf32>
    %c0_8 = arith.constant 0 : index
    %c0_9 = arith.constant 0 : index
    %21 = vector.load %arg4[%c0_8, %c0_9] : memref<8x8xf32, #tpu.memory_space<vmem>>, vector<8x8xf32>
    tpu.vector_store %arg4[%c0_8, %c0_9], %20 {strides = array<i32>} : memref<8x8xf32, #tpu.memory_space<vmem>>, vector<8x8xf32>,
    return
  }
  func.func @transform_0(%arg0: i32) -> (i32, i32) {
    %c0_i32 = arith.constant 0 : i32
    %c0_i32_0 = arith.constant 0 : i32
    return %arg0, %c0_i32 : i32, i32
  }
  func.func @transform_1(%arg0: i32) -> (i32, i32) {
    %c0_i32 = arith.constant 0 : i32
    %c0_i32_0 = arith.constant 0 : i32
    %c0_i32_1 = arith.constant 0 : i32
    return %c0_i32, %c0_i32_0 : i32, i32
  }
  func.func @transform_2(%arg0: i32) -> (i32, i32) {
    %c0_i32 = arith.constant 0 : i32
    %c0_i32_0 = arith.constant 0 : i32
    %c0_i32_1 = arith.constant 0 : i32
    return %c0_i32, %c0_i32_0 : i32, i32
  }
  func.func @transform_3(%arg0: i32) -> (i32, i32) {
    %c0_i32 = arith.constant 0 : i32
    %c0_i32_0 = arith.constant 0 : i32
    return %c0_i32, %arg0 : i32, i32
  }
}

</mosaic_0001>

<llo_original>
// kernel: tpu_custom_call.1
$region0: #{tpu_custom_call.1}
  #allocation0 [shape = 'u32[]', space=smem, size = 0x4, offset = 0x4, fixed_abs, tag = 'smem constant byte address 0x4 - core index']
  #allocation1 [shape = 'u32[144,128]{1,0:T(1,128)}', space=vmem, size = 0x12000, scoped, tag = 'internal scratch']
  %s0 = inlined_call_operand.vmem [shape: f32[8,32], index: 0, kind: input, shape index: {}]
  %s1 = inlined_call_operand.hbm [shape: f32[8,32], index: 1, kind: input, shape index: {}]
  %s2 = inlined_call_operand.vmem [shape: f32[8,1], index: 2, kind: input, shape index: {}]
  %s3 = inlined_call_operand.hbm [shape: f32[8,8], index: 3, kind: output, shape index: {}]
  %s4 = sld [smem:[#allocation0]]
  $region26: #{tpu_custom_call.1} parent=0
    _
  %s6 = ssub.s32 1, %s4
  %s7 = scalar_select 0, %s6, %s4
  $region1: #{tpu_custom_call.1} parent=0
    #allocation2 [shape = 'u8[4096]{0}', space=vmem, size = 0x1000, scoped, tag = 'input window, operand 1, single buffered']
    #allocation3 [shape = 's32[1]{0}', space=sflag, size = 0x4, scoped, tag = 'scoped memory for tpu_custom_call.1']
    #allocation4 [shape = 's32[1]{0}', space=sflag, size = 0x4, scoped, tag = 'scoped memory for tpu_custom_call.1']
    #allocation5 [shape = 'u8[4096]{0}', space=vmem, size = 0x1000, scoped, tag = 'output window, operand 0, single buffered']
    %8 = vsyncpa [#allocation3], 0
    %9 = vsyncpa [#allocation4], 0
    // Predicated region
    $region2: #{tpu_custom_call.1} parent=1 // pred_check
      _
    $region3: #{tpu_custom_call.1} parent=1 // pred_check_branch
      %11 = sbr.rel (0) target = $region5
    $region4: #{tpu_custom_call.1} parent=1 // pred_region
      _
    $region5: #{tpu_custom_call.1} parent=1 // pred_fallthru
      _
    // Predicated region
    $region6: #{tpu_custom_call.1} parent=1 // pred_check
      _
    $region7: #{tpu_custom_call.1} parent=1 // pred_check_branch
      %13 = sbr.rel (0) target = $region9
    $region8: #{tpu_custom_call.1} parent=1 // pred_region
      %s15 = ssub.s32 128, 128
      %16 = vsyncadd [#allocation3], %s15
      %s18 = sshll.u32 [#allocation2], 4
      %s19 = int_to_ptr.vmem [resolvable:$true] %s18
      %21 = dma.hbm_to_vmem [thread:$0]  %s1, 128, %s19, [#allocation3]
    $region9: #{tpu_custom_call.1} parent=1 // pred_fallthru
      _
    // Predicated region
    $region10: #{tpu_custom_call.1} parent=1 // pred_check
      _
    $region11: #{tpu_custom_call.1} parent=1 // pred_check_branch
      %23 = sbr.rel (0) target = $region13
    $region12: #{tpu_custom_call.1} parent=1 // pred_region
      _
    $region13: #{tpu_custom_call.1} parent=1 // pred_fallthru
      _
    // Predicated region
    $region14: #{tpu_custom_call.1} parent=1 // pred_check
      _
    $region15: #{tpu_custom_call.1} parent=1 // pred_check_branch
      %25 = sbr.rel (0) target = $region17
    $region16: #{tpu_custom_call.1} parent=1 // pred_region
      %26 = dma.done [#allocation3], 128
    $region17: #{tpu_custom_call.1} parent=1 // pred_fallthru
      _
    %v27 = vld [vmem:[#allocation2] sm:$0xff]
    %v28 = vld [vmem:[%s0] sm:$0xff]
    %v29 = vld [vmem:[%s2] sm:$0xff]
    %31 = vset.pattern.permute.xlu0 0
    %32 = vperm.xlu0 %31, %v29
    %v33 = vpop.permute.xlu0 %32
    %vm35 = vcmask 261120
    %v37 = vsel %vm35, %v27, 0
    %v40 = vsel %vm35, %v28, 0
    %42 = vmatprep.subr.mxu0 0.0
    %43 = vmatpush1.xpose.msra.mxu0 %v40
    %44 = vmatprep.subr.mxu0 0.0
    %45 = vmatpush1.xpose.msra.mxu0 0.0
    %46 = vmatprep.subr.mxu0 0.0
    %47 = vmatpush1.xpose.msra.mxu0 0.0
    %48 = vmatprep.subr.mxu0 0.0
    %49 = vmatpush1.xpose.msra.mxu0 0.0
    %50 = vmatprep.subr.mxu0 0.0
    %51 = vmatpush1.xpose.msra.mxu0 0.0
    %52 = vmatprep.subr.mxu0 0.0
    %53 = vmatpush1.xpose.msra.mxu0 0.0
    %54 = vmatprep.subr.mxu0 0.0
    %55 = vmatpush1.xpose.msra.mxu0 0.0
    %56 = vmatprep.subr.mxu0 0.0
    %57 = vmatpush1.xpose.msra.mxu0 0.0
    %58 = vmatprep.subr.mxu0 0.0
    %59 = vmatpush1.xpose.msra.mxu0 0.0
    %60 = vmatprep.subr.mxu0 0.0
    %61 = vmatpush1.xpose.msra.mxu0 0.0
    %62 = vmatprep.subr.mxu0 0.0
    %63 = vmatpush1.xpose.msra.mxu0 0.0
    %64 = vmatprep.subr.mxu0 0.0
    %65 = vmatpush1.xpose.msra.mxu0 0.0
    %66 = vmatprep.subr.mxu0 0.0
    %67 = vmatpush1.xpose.msra.mxu0 0.0
    %68 = vmatprep.subr.mxu0 0.0
    %69 = vmatpush1.xpose.msra.mxu0 0.0
    %70 = vmatprep.subr.mxu0 0.0
    %71 = vmatpush1.xpose.msra.mxu0 0.0
    %72 = vmatprep.subr.mxu0 0.0
    %73 = vmatpush1.xpose.msra.mxu0 0.0
    %74 = vmatprep.subr.mxu0 0.0
    %75 = vmatpush1.xpose.msra.mxu0 0.0
    %76 = vmatprep.subr.mxu0 0.0
    %77 = vmatpush1.xpose.msra.mxu0 0.0
    %78 = vmatprep.subr.mxu0 0.0
    %79 = vmatpush1.xpose.msra.mxu0 0.0
    %80 = vmatprep.subr.mxu0 0.0
    %81 = vmatpush1.xpose.msra.mxu0 0.0
    %82 = vmatprep.subr.mxu0 0.0
    %83 = vmatpush1.xpose.msra.mxu0 0.0
    %84 = vmatprep.subr.mxu0 0.0
    %85 = vmatpush1.xpose.msra.mxu0 0.0
    %86 = vmatprep.subr.mxu0 0.0
    %87 = vmatpush1.xpose.msra.mxu0 0.0
    %88 = vmatprep.subr.mxu0 0.0
    %89 = vmatpush1.xpose.msra.mxu0 0.0
    %90 = vmatprep.subr.mxu0 0.0
    %91 = vmatpush1.xpose.msra.mxu0 0.0
    %92 = vmatprep.subr.mxu0 0.0
    %93 = vmatpush1.xpose.msra.mxu0 0.0
    %94 = vmatprep.subr.mxu0 0.0
    %95 = vmatpush1.xpose.msra.mxu0 0.0
    %96 = vmatprep.subr.mxu0 0.0
    %97 = vmatpush1.xpose.msra.mxu0 0.0
    %98 = vmatprep.subr.mxu0 0.0
    %99 = vmatpush1.xpose.msra.mxu0 0.0
    %100 = vmatprep.subr.mxu0 0.0
    %101 = vmatpush1.xpose.msra.mxu0 0.0
    %102 = vmatprep.subr.mxu0 0.0
    %103 = vmatpush1.xpose.msra.mxu0 0.0
    %104 = vmatprep.subr.mxu0 0.0
    %105 = vmatpush1.xpose.msra.mxu0 0.0
    %106 = vmatprep.mubr.f32.mxu0 0.0
    %107 = vmatmul.mubr.f32.gmra.mrb[0].mxu0 %v37
    %v108 = vpop.f32.mrb[0].mxu0
    %v109 = vadd.f32 %v33, %v108
    %v110 = vpop.f32.mrb[0].mxu0
    %111 = vdwg.mxu0
    %v112 = vlaneseq
    %v113 = vshrl.u32 %v112, 7
    %vm114 = vcmp.lt.s32.totalorder %v113, 5
    %v115 = vsel %vm114, %v109, -1e+30
    %vm116 = vcmask 64512
    %v117 = vsel %vm116, %v115, -inf
    %v118 = vrot.slane %v117, 4
    %v119 = vmax.f32 %v117, %v118
    %v120 = vrot.slane %v119, 2
    %v121 = vmax.f32 %v119, %v120
    %v122 = vrot.slane %v121, 1
    %v123 = vmax.f32 %v121, %v122
    %v124 = vsub.f32 %v115, %v123
    %v125 = vmul.f32 %v124, 1.442695
    %v126 = vpow.pop %v125
    %v127 = vsel %vm116, %v126, 0.0
    %v128 = vrot.slane %v127, 4
    %v129 = vadd.f32 %v127, %v128
    %v130 = vrot.slane %v129, 2
    %v131 = vadd.f32 %v129, %v130
    %v132 = vrot.slane %v131, 1
    %v133 = vadd.f32 %v131, %v132
    %v134 = vrcp.pop %v133
    %v135 = vmul.f32 %v126, %v134
    %136 = vst.msk [vmem:[#allocation5] sm:$0xff] %vm116, %v135
    // Predicated region
    $region18: #{tpu_custom_call.1} parent=1 // pred_check
      _
    $region19: #{tpu_custom_call.1} parent=1 // pred_check_branch
      %138 = sbr.rel (0) target = $region21
    $region20: #{tpu_custom_call.1} parent=1 // pred_region
      %s140 = ssub.s32 128, 128
      %141 = vsyncadd [#allocation4], %s140
      %s143 = sshll.u32 [#allocation5], 4
      %s144 = int_to_ptr.vmem [resolvable:$true] %s143
      %146 = dma.vmem_to_hbm [thread:$0]  %s144, 128, %s3, [#allocation4]
    $region21: #{tpu_custom_call.1} parent=1 // pred_fallthru
      _
    // Predicated region
    $region22: #{tpu_custom_call.1} parent=1 // pred_check
      _
    $region23: #{tpu_custom_call.1} parent=1 // pred_check_branch
      %148 = sbr.rel (0) target = $region25
    $region24: #{tpu_custom_call.1} parent=1 // pred_region
      %149 = dma.done [#allocation4], 128
    $region25: #{tpu_custom_call.1} parent=1 // pred_fallthru
      _
    %150 = vsyncpa [#allocation3], 1
    %151 = vsyncpa [#allocation4], 1

</llo_original>
